<compile_context>
chip_gen: v5e
topology: v5e:2x2
jax: 0.10.0
libtpu: 0.0.40
codegen_flags: <defaults>
</compile_context>

<pallas_src>
import math

import jax
import jax.numpy as jnp
from jax import lax
from jax.experimental import pallas as pl
from jax.experimental.pallas import tpu as pltpu


def _contact_kernel(x_ref, xw_ref, bias_ref, out_ref):
    # x_ref:    (1, TI, H)     row tile of the cropped/padded sequence (bf16)
    # xw_ref:   (1, H, 2*TJ)   Wp-scaled, class-interleaved x^T column tile (bf16)
    # bias_ref: (1, 2)         Linear bias, SMEM scalars (f32)
    # out_ref:  (1, TI, 2*TJ)  interleaved prediction block
    acc = jnp.dot(x_ref[0], xw_ref[0], preferred_element_type=jnp.float32)
    # Even lanes are class 0, odd lanes class 1 (block lane-offset is even, so
    # local parity == global parity).
    lane = lax.broadcasted_iota(jnp.int32, acc.shape, 1)
    b0 = bias_ref[0, 0]
    b1 = bias_ref[0, 1]
    acc = acc + jnp.where((lane & 1) == 0, b0, b1)
    out_ref[0] = acc.astype(out_ref.dtype)


def _round_up(n, m):
    return ((n + m - 1) // m) * m


def _pick_tiles(lp, h, op_bytes, out_bytes, budget_bytes=40 * 2**20):
    """Row/column tiles.  Prefer a whole-row (VMEM-resident) column operand."""
    if lp <= 512:
        ti = lp
    else:
        ti = max(t for t in (512, 256, 128) if lp % t == 0)

    def footprint(tj):  # double-buffered x, xw and out blocks
        return 2 * (ti * h * op_bytes + h * 2 * tj * op_bytes
                    + ti * 2 * tj * out_bytes)

    tj = lp  # resident: read once per batch, re-used across every row tile
    if footprint(tj) > budget_bytes:
        for t in (512, 256, 128):
            if lp % t == 0 and footprint(t) <= budget_bytes:
                tj = t
                break
        else:
            tj = 128 if lp % 128 == 0 else lp
    return ti, tj, footprint(tj)


def pairwise_contact_head(inputs, weight, bias, *, out_dtype=None,
                          use_bf16_mxu=True):
    """inputs: (B, L, H); weight: (2H, 2) (= PyTorch W^T); bias: (2,).

    Returns the symmetrized, cropped prediction of shape (B, L-2, L-2, 2),
    matching PairwiseContactPredictionHead.forward(inputs, ...)[0] (eval mode).
    """
    B, L, H = inputs.shape
    assert weight.shape == (2 * H, 2) and bias.shape == (2,)
    L_ = L - 2
    out_dtype = inputs.dtype if out_dtype is None else out_dtype
    op_dtype = (jnp.bfloat16
                if use_bf16_mxu and inputs.dtype == jnp.float32
                else inputs.dtype)

    # Crop the border BEFORE the kernel, then pad the sequence axis so tiles
    # stay MXU/lane friendly for any L (padded rows are zero, sliced off later).
    x = inputs[:, 1:-1, :]
    lp = _round_up(L_, 8) if L_ <= 256 else _round_up(L_, 128)
    if lp != L_:
        x = jnp.pad(x, ((0, 0), (0, lp - L_), (0, 0)))

    # Only the `prod` half of the weight survives symmetrization.  Build the
    # class-interleaved j-operand xw[b, h, 2j+c] = x[b, j, h] * Wp[h, c] once
    # (input-sized XLA pass), cast MXU operands to bf16.
    wp = weight[:H, :].astype(jnp.float32)                     # (H, 2)
    x_t = jnp.transpose(x, (0, 2, 1)).astype(jnp.float32)      # (B, H, Lp)
    xw = (x_t[:, :, :, None] * wp[None, :, None, :]).reshape(B, H, 2 * lp)
    xw = xw.astype(op_dtype)
    x_op = x.astype(op_dtype)
    bias_2d = bias.reshape(1, 2).astype(jnp.float32)

    op_b = jnp.dtype(op_dtype).itemsize
    out_b = jnp.dtype(out_dtype).itemsize
    ti, tj, fp = _pick_tiles(lp, H, op_b, out_b)
    grid = (B, lp // ti, lp // tj)

    # Above v5e's 16 MiB scoped default, below v7x's 64 MiB physical VMEM.
    vmem_limit = int(min(56 * 2**20, max(32 * 2**20, fp + 8 * 2**20)))

    planes = pl.pallas_call(
        _contact_kernel,
        out_shape=jax.ShapeDtypeStruct((B, lp, 2 * lp), out_dtype),
        grid_spec=pltpu.PrefetchScalarGridSpec(
            num_scalar_prefetch=0,
            grid=grid,
            in_specs=[
                pl.BlockSpec((1, ti, H), lambda b, i, j: (b, i, 0)),
                pl.BlockSpec((1, H, 2 * tj), lambda b, i, j: (b, 0, j)),
                pl.BlockSpec((1, 2), lambda b, i, j: (0, 0),
                             memory_space=pltpu.MemorySpace.SMEM),
            ],
            out_specs=pl.BlockSpec((1, ti, 2 * tj), lambda b, i, j: (b, i, j)),
        ),
        compiler_params=pltpu.CompilerParams(
            # H is contracted inside the kernel; every grid axis is independent
            # (no carried accumulator), so megacore may shard any of them.
            dimension_semantics=("parallel", "parallel", "parallel"),
            vmem_limit_bytes=vmem_limit,
        ),
    )(x_op, xw, bias_2d)

    if lp != L_:
        planes = planes[:, :L_, :2 * L_]
    # (B, L', 2*L') is row-major identical to (B, L', L', 2): free reshape,
    # no transpose / extra HBM pass over the output.
    return planes.reshape(B, L_, L_, 2)


def _reference(inputs, weight, bias):
    """Pure-JAX replica of the PyTorch forward (targets=None, eval mode)."""
    prod = inputs[:, :, None, :] * inputs[:, None, :, :]
    diff = inputs[:, :, None, :] - inputs[:, None, :, :]
    feat = jnp.concatenate([prod, diff], axis=-1)            # (B, L, L, 2H)
    pred = feat @ weight + bias                               # (B, L, L, 2)
    pred = (pred + jnp.transpose(pred, (0, 2, 1, 3))) / 2
    return pred[:, 1:-1, 1:-1, :]


if __name__ == "__main__":
    B, L, H = 2, 8, 32                       # batch, seq, hidden_size

    key = jax.random.PRNGKey(0)
    k_x, k_w, k_b = jax.random.split(key, 3)

    inputs = jax.random.normal(k_x, (B, L, H), dtype=jnp.float32)

    # Deterministic Linear(2H -> 2) params (PyTorch weight is (2, 2H); keep W^T).
    bound = 1.0 / math.sqrt(2 * H)
    weight = jax.random.uniform(k_w, (2 * H, 2), jnp.float32, -bound, bound)
    bias = jax.random.uniform(k_b, (2,), jnp.float32, -bound, bound)

    out = jax.jit(pairwise_contact_head)(inputs, weight, bias)
    out = jax.block_until_ready(out)

    ref = _reference(inputs, weight, bias)
    assert out.shape == (B, L - 2, L - 2, 2), out.shape
    # bf16 MXU operands (f32 accumulation) => slightly looser tolerance vs the
    # pure-f32 PyTorch-equivalent reference.
    max_err = float(jnp.max(jnp.abs(out - ref)))
    assert jnp.allclose(out, ref, rtol=2e-2, atol=4e-2), max_err

    print("KERNEL_OK")
</pallas_src>

<mosaic_0001>
module attributes {stable_mosaic.version = 11 : i64} {
  func.func @_contact_kernel(%arg0: i32, %arg1: i32, %arg2: i32, %arg3: memref<1x8x32xbf16, #tpu.memory_space<vmem>>, %arg4: memref<1x32x16xbf16, #tpu.memory_space<vmem>>, %arg5: memref<1x2xf32, #tpu.memory_space<smem>>, %arg6: memref<1x8x16xf32, #tpu.memory_space<vmem>>) attributes {dimension_semantics = [#tpu.dimension_semantics<parallel>, #tpu.dimension_semantics<parallel>, #tpu.dimension_semantics<parallel>], iteration_bounds = array<i64: 2, 1, 1>, scalar_prefetch = 0 : i64, scratch_operands = 0 : i64, tpu.core_type = #tpu.core_type<tc>, window_params = [{transform_indices = @transform_0, window_bounds = array<i64: 1, 8, 32>}, {transform_indices = @transform_1, window_bounds = array<i64: 1, 32, 16>}, {transform_indices = @transform_2, window_bounds = array<i64: 1, 2>}, {transform_indices = @transform_3, window_bounds = array<i64: 1, 8, 16>}]} {
    %c0 = arith.constant 0 : index
    %c0_0 = arith.constant 0 : index
    %c0_1 = arith.constant 0 : index
    %0 = vector.load %arg3[%c0, %c0_0, %c0_1] : memref<1x8x32xbf16, #tpu.memory_space<vmem>>, vector<1x8x32xbf16>
    %1 = vector.shape_cast %0 : vector<1x8x32xbf16> to vector<8x32xbf16>
    %c0_2 = arith.constant 0 : index
    %c0_3 = arith.constant 0 : index
    %c0_4 = arith.constant 0 : index
    %2 = vector.load %arg4[%c0_2, %c0_3, %c0_4] : memref<1x32x16xbf16, #tpu.memory_space<vmem>>, vector<1x32x16xbf16>
    %3 = vector.shape_cast %2 : vector<1x32x16xbf16> to vector<32x16xbf16>
    %cst = arith.constant dense<0.000000e+00> : vector<8x16xf32>
    %4 = tpu.matmul %1, %3, %cst {dimension_numbers = #tpu.dot_dimension_numbers<[1], [0], [0], [1], [0, 0, 1, 1], [], []>} : vector<8x32xbf16>, vector<32x16xbf16>, vector<8x16xf32> -> vector<8x16xf32>
    %5 = tpu.iota {dimensions = array<i32: 1>} : vector<8x16xi32>
    %c0_5 = arith.constant 0 : index
    %c0_6 = arith.constant 0 : index
    %6 = memref.load %arg5[%c0_5, %c0_6] : memref<1x2xf32, #tpu.memory_space<smem>>
    %c0_7 = arith.constant 0 : index
    %c1 = arith.constant 1 : index
    %7 = memref.load %arg5[%c0_7, %c1] : memref<1x2xf32, #tpu.memory_space<smem>>
    %c1_i32 = arith.constant 1 : i32
    %8 = vector.broadcast %c1_i32 : i32 to vector<8x16xi32>
    %9 = arith.andi %5, %8 : vector<8x16xi32>
    %c0_i32 = arith.constant 0 : i32
    %10 = vector.broadcast %c0_i32 : i32 to vector<8x16xi32>
    %11 = arith.cmpi eq, %9, %10 : vector<8x16xi32>
    %12 = vector.broadcast %6 : f32 to vector<8x16xf32>
    %13 = vector.broadcast %7 : f32 to vector<8x16xf32>
    %14 = arith.select %11, %12, %13 : vector<8x16xi1>, vector<8x16xf32>
    %15 = arith.addf %4, %14 : vector<8x16xf32>
    %c0_8 = arith.constant 0 : index
    %c0_9 = arith.constant 0 : index
    %c0_10 = arith.constant 0 : index
    %16 = vector.load %arg6[%c0_8, %c0_9, %c0_10] : memref<1x8x16xf32, #tpu.memory_space<vmem>>, vector<1x8x16xf32>
    %17 = vector.shape_cast %16 : vector<1x8x16xf32> to vector<8x16xf32>
    %18 = vector.shape_cast %15 : vector<8x16xf32> to vector<1x8x16xf32>
    tpu.vector_store %arg6[%c0_8, %c0_9, %c0_10], %18 {strides = array<i32>} : memref<1x8x16xf32, #tpu.memory_space<vmem>>, vector<1x8x16xf32>,
    return
  }
  func.func @transform_0(%arg0: i32, %arg1: i32, %arg2: i32) -> (i32, i32, i32) {
    %c0_i32 = arith.constant 0 : i32
    %c0_i32_0 = arith.constant 0 : i32
    return %arg0, %arg1, %c0_i32 : i32, i32, i32
  }
  func.func @transform_1(%arg0: i32, %arg1: i32, %arg2: i32) -> (i32, i32, i32) {
    %c0_i32 = arith.constant 0 : i32
    %c0_i32_0 = arith.constant 0 : i32
    return %arg0, %c0_i32, %arg2 : i32, i32, i32
  }
  func.func @transform_2(%arg0: i32, %arg1: i32, %arg2: i32) -> (i32, i32) {
    %c0_i32 = arith.constant 0 : i32
    %c0_i32_0 = arith.constant 0 : i32
    %c0_i32_1 = arith.constant 0 : i32
    return %c0_i32, %c0_i32_0 : i32, i32
  }
  func.func @transform_3(%arg0: i32, %arg1: i32, %arg2: i32) -> (i32, i32, i32) {
    %c0_i32 = arith.constant 0 : i32
    return %arg0, %arg1, %arg2 : i32, i32, i32
  }
}

</mosaic_0001>

<llo_original>
// kernel: pairwise_contact_head.1
$region0: #{pairwise_contact_head.1}
  #allocation0 [shape = 'u32[]', space=smem, size = 0x4, offset = 0x4, fixed_abs, tag = 'smem constant byte address 0x4 - core index']
  #allocation1 [shape = 'u32[72,128]{1,0:T(1,128)}', space=vmem, size = 0x9000, scoped, tag = 'internal scratch']
  %s0 = inlined_call_operand.vmem [shape: bf16[2,8,32], index: 0, kind: input, shape index: {}]
  %s1 = inlined_call_operand.vmem [shape: bf16[2,32,16], index: 1, kind: input, shape index: {}]
  %s2 = inlined_call_operand.vmem [shape: f32[1,2], index: 2, kind: input, shape index: {}]
  %s3 = inlined_call_operand.vmem [shape: f32[2,8,16], index: 3, kind: output, shape index: {}]
  %s4 = sld [smem:[#allocation0]]
  $region49: #{pairwise_contact_head.1} parent=0
    _
  %s6 = ssub.s32 1, %s4
  %s7 = scalar_select 0, %s6, %s4
  $region1: #{pairwise_contact_head.1} parent=0
    #allocation2 [shape = 'u8[512]{0}', space=smem, size = 0x200, scoped, tag = 'input window, operand 2, single buffered']
    #allocation3 [shape = 's32[2]{0}', space=sflag, size = 0x8, scoped, tag = 'scoped memory for pairwise_contact_head.1']
    %8 = vsyncpa [#allocation3], 0
    loop: start=0, step=1, limit=4
    $region2: #{pairwise_contact_head.1} parent=1 // loop_pre_header
      _
    $region3: #{pairwise_contact_head.1} parent=1 // loop_header
      %s10 = sphi 0, %s14
      %p11 = scmp.ge.s32.totalorder %s10, 4
      %s17 = sphi 0, %s36
      %s18 = sphi 0, %s32
      %s19 = sphi 0, %s28
      %s20 = sphi 0, %s17
      %s21 = sphi 0, %s18
      %s22 = sphi 0, %s19
      %s23 = sphi 0, %s20
      %s24 = sphi 0, %s21
      %s25 = sphi 0, %s22
      %s41 = sphi 0, %s43
      %s44 = sphi 0, %s41
      %s45 = sphi 0, %s44
      %s61 = sphi 0, %s45
      %s69 = sphi 0, %s71
      %s72 = sphi 0, %s69
      %s73 = sphi 0, %s72
      %s89 = sphi 0, %s73
      %s93 = sphi 0, %s93
      %s95 = sphi 0, %s93
      %s96 = sphi 0, %s95
      %s110 = sphi 0, %s96
      %s120 = sphi 0, %s122
      %s123 = sphi 0, %s120
      %s124 = sphi 0, %s123
      %s140 = sphi 0, %s124
    $region4: #{pairwise_contact_head.1} parent=1 // loop_header_branch
      %13 = sbr.rel (%p11) target = $region8
    $region5: #{pairwise_contact_head.1} parent=1 // loop_body
      %s15 = ssub.s32 %s10, 1
      %s16 = ssub.s32 %s10, 2
      %s26 = sadd.s32 1, %s19
      %p27 = scmp.ge.s32.totalorder %s26, 1
      %s28 = scalar_select %p27, 0, %s26
      %s29 = sadd.s32 1, %s18
      %s30 = scalar_select %p27, %s29, %s18
      %p31 = scmp.ge.s32.totalorder %s30, 1
      %s32 = scalar_select %p31, 0, %s30
      %s33 = sadd.s32 1, %s17
      %s34 = scalar_select %p31, %s33, %s17
      %p35 = scmp.ge.s32.totalorder %s34, 2
      %s36 = scalar_select %p35, 0, %s34
      %s37 = ssub.s32 %s17, %s36
      %s38 = ssub.s32 %s18, %s32
      %s39 = sor.u32 %s37, %s38
      %p40 = scmp.eq.s32.totalorder %s39, 0
      %s42 = sadd.s32 %s41, 1
      %s43 = scalar_select %p40, %s41, %s42
      %p46 = pneg %p40
      %p47 = scmp.eq.s32.totalorder %s10, 1
      %p48 = por %p46, %p47
      %p49 = scmp.ne.s32.totalorder %s41, %s44
      %p50 = scmp.eq.s32.totalorder %s10, 0
      %p51 = por %p49, %p50
      %p52 = scmp.ne.s32.totalorder %s41, %s44
      %p53 = scmp.eq.s32.totalorder %s15, 1
      %p54 = por %p52, %p53
      %p55 = scmp.ne.s32.totalorder %s44, %s45
      %p56 = scmp.eq.s32.totalorder %s15, 0
      %p57 = por %p55, %p56
      %p58 = scmp.ne.s32.totalorder %s44, %s45
      %p59 = scmp.eq.s32.totalorder %s16, 1
      %p60 = por %p58, %p59
      %p62 = scmp.ne.s32.totalorder %s45, %s61
      %p63 = scmp.eq.s32.totalorder %s16, 0
      %p64 = por %p62, %p63
      %s65 = ssub.s32 %s17, %s36
      %s66 = ssub.s32 %s19, %s28
      %s67 = sor.u32 %s65, %s66
      %p68 = scmp.eq.s32.totalorder %s67, 0
      %s70 = sadd.s32 %s69, 1
      %s71 = scalar_select %p68, %s69, %s70
      %p74 = pneg %p68
      %p75 = scmp.eq.s32.totalorder %s10, 1
      %p76 = por %p74, %p75
      %p77 = scmp.ne.s32.totalorder %s69, %s72
      %p78 = scmp.eq.s32.totalorder %s10, 0
      %p79 = por %p77, %p78
      %p80 = scmp.ne.s32.totalorder %s69, %s72
      %p81 = scmp.eq.s32.totalorder %s15, 1
      %p82 = por %p80, %p81
      %p83 = scmp.ne.s32.totalorder %s72, %s73
      %p84 = scmp.eq.s32.totalorder %s15, 0
      %p85 = por %p83, %p84
      %p86 = scmp.ne.s32.totalorder %s72, %s73
      %p87 = scmp.eq.s32.totalorder %s16, 1
      %p88 = por %p86, %p87
      %p90 = scmp.ne.s32.totalorder %s73, %s89
      %p91 = scmp.eq.s32.totalorder %s16, 0
      %p92 = por %p90, %p91
      %s94 = sadd.s32 %s93, 1
      %p97 = scmp.eq.s32.totalorder %s10, 1
      %p98 = scmp.ne.s32.totalorder %s93, %s95
      %p99 = scmp.eq.s32.totalorder %s10, 0
      %p100 = por %p98, %p99
      %p101 = scmp.ne.s32.totalorder %s93, %s95
      %p102 = scmp.eq.s32.totalorder %s15, 1
      %p103 = por %p101, %p102
      %p104 = scmp.ne.s32.totalorder %s95, %s96
      %p105 = scmp.eq.s32.totalorder %s15, 0
      %p106 = por %p104, %p105
      %p107 = scmp.ne.s32.totalorder %s95, %s96
      %p108 = scmp.eq.s32.totalorder %s16, 1
      %p109 = por %p107, %p108
      %p111 = scmp.ne.s32.totalorder %s96, %s110
      %p112 = scmp.eq.s32.totalorder %s16, 0
      %p113 = por %p111, %p112
      %s114 = ssub.s32 %s17, %s36
      %s115 = ssub.s32 %s18, %s32
      %s116 = sor.u32 %s114, %s115
      %s117 = ssub.s32 %s19, %s28
      %s118 = sor.u32 %s116, %s117
      %p119 = scmp.eq.s32.totalorder %s118, 0
      %s121 = sadd.s32 %s120, 1
      %s122 = scalar_select %p119, %s120, %s121
      %p125 = pneg %p119
      %p126 = scmp.eq.s32.totalorder %s10, 1
      %p127 = por %p125, %p126
      %p128 = scmp.ne.s32.totalorder %s120, %s123
      %p129 = scmp.eq.s32.totalorder %s10, 0
      %p130 = por %p128, %p129
      %p131 = scmp.ne.s32.totalorder %s120, %s123
      %p132 = scmp.eq.s32.totalorder %s15, 1
      %p133 = por %p131, %p132
      %p134 = scmp.ne.s32.totalorder %s123, %s124
      %p135 = scmp.eq.s32.totalorder %s15, 0
      %p136 = por %p134, %p135
      %p137 = scmp.ne.s32.totalorder %s123, %s124
      %p138 = scmp.eq.s32.totalorder %s16, 1
      %p139 = por %p137, %p138
      %p141 = scmp.ne.s32.totalorder %s124, %s140
      %p142 = scmp.eq.s32.totalorder %s16, 0
      %p143 = por %p141, %p142
      %p144 = scmp.le.s32.totalorder 1, %s10
      %p145 = scmp.lt.s32.totalorder %s10, 3
      %p146 = pnand %p144, %p145
      %p147 = pneg %p146
      // Predicated region
      $region9: #{pairwise_contact_head.1} parent=5 // pred_check
        _
      $region10: #{pairwise_contact_head.1} parent=5 // pred_check_branch
        %149 = sbr.rel (%p146) target = $region12
      $region11: #{pairwise_contact_head.1} parent=5 // pred_region
        %s150 = ssub.s32 %s10, 1
        // Predicated region
        $region13: #{pairwise_contact_head.1} parent=11 // pred_check
          %p151 = pneg %p106
        $region14: #{pairwise_contact_head.1} parent=11 // pred_check_branch
          %153 = sbr.rel (%p151) target = $region16
        $region15: #{pairwise_contact_head.1} parent=11 // pred_region
          %155 = vsyncadd [#allocation3], 0
          %s157 = sshll.u32 %s2, 4
          %s158 = int_to_ptr.vmem [resolvable:$true] %s157
          %160 = dma.vmem_to_smem %s158, 16, [#allocation2], [#allocation3]
        $region16: #{pairwise_contact_head.1} parent=11 // pred_fallthru
          _
      $region12: #{pairwise_contact_head.1} parent=5 // pred_fallthru
        _
      %p161 = scmp.lt.s32.totalorder %s10, 2
      // Predicated region
      $region17: #{pairwise_contact_head.1} parent=5 // pred_check
        %p162 = pneg %p161
      $region18: #{pairwise_contact_head.1} parent=5 // pred_check_branch
        %164 = sbr.rel (%p162) target = $region20
      $region19: #{pairwise_contact_head.1} parent=5 // pred_region
        // Predicated region
        $region21: #{pairwise_contact_head.1} parent=19 // pred_check
          %p165 = pneg %p51
        $region22: #{pairwise_contact_head.1} parent=19 // pred_check_branch
          %167 = sbr.rel (%p165) target = $region24
        $region23: #{pairwise_contact_head.1} parent=19 // pred_region
          %p168 = scmp.lt.s32.totalorder %s17, 1
          %s169 = scalar_select %p168, %s17, 1
          %p170 = scmp.lt.s32.totalorder %s18, 0
          %s171 = scalar_select %p170, %s18, 0
          %s172 = sadd.s32 %s171, %s169
          %s173 = smul.addr %s172, 4
          %s174 = scalar_lea.vmem %s0, %s173
        $region24: #{pairwise_contact_head.1} parent=19 // pred_fallthru
          _
        // Predicated region
        $region25: #{pairwise_contact_head.1} parent=19 // pred_check
          %p175 = pneg %p79
        $region26: #{pairwise_contact_head.1} parent=19 // pred_check_branch
          %177 = sbr.rel (%p175) target = $region28
        $region27: #{pairwise_contact_head.1} parent=19 // pred_region
          %p178 = scmp.lt.s32.totalorder %s17, 1
          %s179 = scalar_select %p178, %s17, 1
          %p180 = scmp.lt.s32.totalorder %s19, 0
          %s181 = scalar_select %p180, %s19, 0
          %s182 = smul.addr %s179, 4
          %s183 = sadd.s32 %s181, %s182
          %s184 = smul.addr %s183, 4
          %s185 = scalar_lea.vmem %s1, %s184
        $region28: #{pairwise_contact_head.1} parent=19 // pred_fallthru
          _
      $region20: #{pairwise_contact_head.1} parent=5 // pred_fallthru
        _
      %p186 = scmp.le.s32.totalorder 1, %s10
      %p187 = scmp.lt.s32.totalorder %s10, 3
      %p188 = pnand %p186, %p187
      %p189 = pneg %p188
      // Predicated region
      $region29: #{pairwise_contact_head.1} parent=5 // pred_check
        _
      $region30: #{pairwise_contact_head.1} parent=5 // pred_check_branch
        %191 = sbr.rel (%p188) target = $region32
      $region31: #{pairwise_contact_head.1} parent=5 // pred_region
        %s192 = ssub.s32 %s10, 1
        // Predicated region
        $region33: #{pairwise_contact_head.1} parent=31 // pred_check
          %p193 = pneg %p106
        $region34: #{pairwise_contact_head.1} parent=31 // pred_check_branch
          %195 = sbr.rel (%p193) target = $region36
        $region35: #{pairwise_contact_head.1} parent=31 // pred_region
          %197 = dma.done [#allocation3], 16
        $region36: #{pairwise_contact_head.1} parent=31 // pred_fallthru
          _
        %198 = sfence
        %p199 = scmp.lt.s32.totalorder %s20, 1
        %s200 = scalar_select %p199, %s20, 1
        %p201 = scmp.lt.s32.totalorder %s21, 0
        %s202 = scalar_select %p201, %s21, 0
        %s203 = sadd.s32 %s202, %s200
        %s204 = smul.addr %s203, 4
        %s205 = scalar_lea.vmem %s0, %s204
        %p206 = pneg %p57
        %p207 = pneg %p54
        %p208 = scmp.lt.s32.totalorder %s20, 1
        %s209 = scalar_select %p208, %s20, 1
        %p210 = scmp.lt.s32.totalorder %s22, 0
        %s211 = scalar_select %p210, %s22, 0
        %s212 = smul.addr %s209, 4
        %s213 = sadd.s32 %s211, %s212
        %s214 = smul.addr %s213, 4
        %s215 = scalar_lea.vmem %s1, %s214
        %p216 = pneg %p85
        %p217 = pneg %p82
        %p218 = pneg %p106
        %p219 = pneg %p103
        %p220 = pneg %p136
        %p221 = pneg %p133
        %p222 = scmp.lt.s32.totalorder %s20, 1
        %s223 = scalar_select %p222, %s20, 1
        %p224 = scmp.lt.s32.totalorder %s21, 0
        %s225 = scalar_select %p224, %s21, 0
        %p226 = scmp.lt.s32.totalorder %s22, 0
        %s227 = scalar_select %p226, %s22, 0
        %s228 = sadd.s32 %s227, %s225
        %s229 = sadd.s32 %s228, %s223
        %s230 = smul.addr %s229, 8
        %s231 = scalar_lea.vmem %s3, %s230
        %p232 = scmp.lt.s32.totalorder %s20, 1
        %s233 = scalar_select %p232, %s20, 1
        %p234 = scmp.lt.s32.totalorder %s21, 0
        %s235 = scalar_select %p234, %s21, 0
        %s236 = sadd.s32 %s235, %s233
        %s237 = smul.addr %s236, 4
        %s238 = scalar_lea.vmem %s0, %s237
        %p239 = scmp.lt.s32.totalorder %s20, 1
        %s240 = scalar_select %p239, %s20, 1
        %p241 = scmp.lt.s32.totalorder %s22, 0
        %s242 = scalar_select %p241, %s22, 0
        %s243 = smul.addr %s240, 4
        %s244 = sadd.s32 %s242, %s243
        %s245 = smul.addr %s244, 4
        %s246 = scalar_lea.vmem %s1, %s245
        %p247 = scmp.lt.s32.totalorder %s20, 1
        %s248 = scalar_select %p247, %s20, 1
        %p249 = scmp.lt.s32.totalorder %s21, 0
        %s250 = scalar_select %p249, %s21, 0
        %p251 = scmp.lt.s32.totalorder %s22, 0
        %s252 = scalar_select %p251, %s22, 0
        %s253 = sadd.s32 %s252, %s250
        %s254 = sadd.s32 %s253, %s248
        %s255 = smul.addr %s254, 8
        %s256 = scalar_lea.vmem %s3, %s255
        %v258 = vld [vmem:[%s238] sm:$0xf]
        %v259 = vld [vmem:[%s246] sm:$0xf]
        %v260 = vld [vmem:[%s246 + $0x4] sm:$0xf]
        %v261 = vld [vmem:[%s246 + $0x8] sm:$0xf]
        %v262 = vld [vmem:[%s246 + $0xc] sm:$0xf]
        %v263 = vlaneseq
        %v264 = vand.u32 %v263, 127
        %s265 = sld [smem:[#allocation2]]
        %s266 = sld [smem:[#allocation2 + $0x1]]
        %v267 = vand.u32 %v264, 1
        %vm268 = vcmp.eq.s32.totalorder %v267, 0
        %v269 = vstv %s265
        %v270 = vstv %s266
        %v271 = vsel %vm268, %v269, %v270
        %v276 = vunpack.c.l.b16 %v259
        %v277 = vunpack.c.l.b16 %v260
        %v278 = vunpack.c.l.b16 %v261
        %v279 = vunpack.c.l.b16 %v262
        %v280 = vpack.c.b16 %v277, %v276
        %v281 = vpack.c.b16 %v279, %v278
        %vm284 = vcmask 261120
        %v286 = vsel %vm284, %v258, 0
        %288 = vmatpush.bf16.msra.mxu0 0
        %289 = vmatpush.bf16.msra.mxu0 0
        %290 = vmatpush.bf16.msra.mxu0 0
        %291 = vmatpush.bf16.msra.mxu0 0
        %292 = vmatpush.bf16.msra.mxu0 0
        %293 = vmatpush.bf16.msra.mxu0 0
        %294 = vmatpush.bf16.msra.mxu0 %v281
        %295 = vmatpush.bf16.msra.mxu0 %v280
        %296 = vmatmul.bf16.gmra.mxu0 %v286
        %v297 = vpop.f32.mrf.mxu0
        %v298 = vadd.f32 %v271, %v297
        %v299 = vpop.f32.mrf.mxu0
        %300 = vdwg.mxu0
        %vm301 = vcmask 130048
        %302 = vst.msk [vmem:[%s256] sm:$0xff] %vm301, %v298
        %p303 = scmp.lt.s32.totalorder %s20, 1
        %s304 = scalar_select %p303, %s20, 1
        %p305 = scmp.lt.s32.totalorder %s21, 0
        %s306 = scalar_select %p305, %s21, 0
        %p307 = scmp.lt.s32.totalorder %s22, 0
        %s308 = scalar_select %p307, %s22, 0
        %s309 = sadd.s32 %s308, %s306
        %s310 = sadd.s32 %s309, %s304
        %s311 = smul.addr %s310, 8
        %s312 = scalar_lea.vmem %s3, %s311
        // Predicated region
        $region37: #{pairwise_contact_head.1} parent=31 // pred_check
          %p313 = pneg %p133
        $region38: #{pairwise_contact_head.1} parent=31 // pred_check_branch
          %315 = sbr.rel (%p313) target = $region40
        $region39: #{pairwise_contact_head.1} parent=31 // pred_region
          _
        $region40: #{pairwise_contact_head.1} parent=31 // pred_fallthru
          _
      $region32: #{pairwise_contact_head.1} parent=5 // pred_fallthru
        _
      %p316 = scmp.le.s32.totalorder 2, %s10
      // Predicated region
      $region41: #{pairwise_contact_head.1} parent=5 // pred_check
        %p317 = pneg %p316
      $region42: #{pairwise_contact_head.1} parent=5 // pred_check_branch
        %319 = sbr.rel (%p317) target = $region44
      $region43: #{pairwise_contact_head.1} parent=5 // pred_region
        %s320 = ssub.s32 %s10, 2
        // Predicated region
        $region45: #{pairwise_contact_head.1} parent=43 // pred_check
          %p321 = pneg %p139
        $region46: #{pairwise_contact_head.1} parent=43 // pred_check_branch
          %323 = sbr.rel (%p321) target = $region48
        $region47: #{pairwise_contact_head.1} parent=43 // pred_region
          %p324 = scmp.lt.s32.totalorder %s23, 1
          %s325 = scalar_select %p324, %s23, 1
          %p326 = scmp.lt.s32.totalorder %s24, 0
          %s327 = scalar_select %p326, %s24, 0
          %p328 = scmp.lt.s32.totalorder %s25, 0
          %s329 = scalar_select %p328, %s25, 0
          %s330 = sadd.s32 %s329, %s327
          %s331 = sadd.s32 %s330, %s325
          %s332 = smul.addr %s331, 8
          %s333 = scalar_lea.vmem %s3, %s332
        $region48: #{pairwise_contact_head.1} parent=43 // pred_fallthru
          _
      $region44: #{pairwise_contact_head.1} parent=5 // pred_fallthru
        _
    $region6: #{pairwise_contact_head.1} parent=1 // loop_footer
      %s14 = sadd.s32 1, %s10
    $region7: #{pairwise_contact_head.1} parent=1 // loop_footer_branch
      %9 = sbr.rel target = $region3
    $region8: #{pairwise_contact_head.1} parent=1 // loop_exit
      _
    %334 = vsyncpa [#allocation3], 1
    %s335 = scalar_lea.sflag [#allocation3], 1
    %336 = vsyncpa %s335, 1

</llo_original>
